<compile_context>
chip_gen: v7x
topology: tpu7x:2x2x1
jax: 0.10.0
libtpu: 0.0.40
codegen_flags: <defaults>
</compile_context>

<pallas_src>
import functools
import math

import jax
import jax.numpy as jnp
from jax.experimental import pallas as pl
from jax.experimental.pallas import tpu as pltpu


def _round_up(x, m):
    return ((x + m - 1) // m) * m


def _pick_tile(total, target, align):
    """Largest multiple of `align` that divides `total` and is <= target."""
    best = align
    cand = align
    limit = min(target, total)
    while cand <= limit:
        if total % cand == 0:
            best = cand
        cand += align
    return best


# ----------------------------------------------------------------------------
# Parameter preparation (one-time; all weight-sized ops live here)
# ----------------------------------------------------------------------------
def prepare_rnncell_params(w_ih, w_hh, b_ih, b_hh, mxu_dtype=None):
    """One-time prep. w_ih: (H, I), w_hh: (H, H), biases: (H,).

    Returns padded, pre-transposed (and optionally bf16-cast) operands:
      w_ih_t: (Ip, Hp)   Ip = round_up(I, 128), Hp = round_up(H, 128)
      w_hh_t: (Hp, Hp)
      bias  : (1, Hp)    float32 (b_ih + b_hh), epilogue stays f32.
    """
    H, I = w_ih.shape
    Ip = _round_up(I, 128)
    Hp = _round_up(H, 128)
    op_dtype = jnp.dtype(mxu_dtype) if mxu_dtype is not None else jnp.dtype(w_ih.dtype)
    w_ih_t = jnp.pad(jnp.transpose(w_ih), ((0, Ip - I), (0, Hp - H))).astype(op_dtype)
    w_hh_t = jnp.pad(jnp.transpose(w_hh), ((0, Hp - H), (0, Hp - H))).astype(op_dtype)
    bias = jnp.pad((b_ih + b_hh).astype(jnp.float32).reshape(1, -1),
                   ((0, 0), (0, Hp - H)))
    return w_ih_t, w_hh_t, bias


# ----------------------------------------------------------------------------
# Single-step RNNCell kernel
# ----------------------------------------------------------------------------
def rnn_cell_kernel(x_ref, h_ref, wih_ref, whh_ref, b_ref, out_ref):
    """One (TM, TN) output tile; both K reductions (I and H) done in-step."""
    acc = jnp.dot(x_ref[...], wih_ref[...], preferred_element_type=jnp.float32)
    acc = acc + jnp.dot(h_ref[...], whh_ref[...],
                        preferred_element_type=jnp.float32)
    out_ref[...] = jnp.tanh(acc + b_ref[...]).astype(out_ref.dtype)


@functools.partial(jax.jit, static_argnames=("tm", "tn"))
def rnn_cell_forward(x, h, w_ih_t, w_hh_t, bias, *, tm=128, tn=512):
    """x: (B, I), h: (B, H); weights already padded/cast by prep. -> (B, H)."""
    B, I = x.shape
    H = h.shape[1]
    Ip, Hp = w_ih_t.shape
    op_dtype = w_ih_t.dtype

    # bf16/int8 sublane packing needs a taller second-minor dim.
    b_align = 8 if op_dtype.itemsize >= 4 else 16
    Bp = _round_up(max(B, b_align), b_align)

    # Per-call ops only touch the (small) activations, never the weights.
    x_p = jnp.pad(x, ((0, Bp - B), (0, Ip - I))).astype(op_dtype)
    h_p = jnp.pad(h, ((0, Bp - B), (0, Hp - H))).astype(op_dtype)

    TM = _pick_tile(Bp, tm, b_align)
    TN = _pick_tile(Hp, tn, 128)
    # v7x megacore: expose >= 2 parallel output tiles when the shape allows.
    if (Bp // TM) * (Hp // TN) < 2 and TN >= 256 and (TN // 2) % 128 == 0:
        TN //= 2

    out = pl.pallas_call(
        rnn_cell_kernel,
        out_shape=jax.ShapeDtypeStruct((Bp, Hp), x.dtype),
        grid_spec=pltpu.PrefetchScalarGridSpec(
            num_scalar_prefetch=0,
            grid=(Bp // TM, Hp // TN),
            in_specs=[
                pl.BlockSpec((TM, Ip), lambda i, j: (i, 0)),   # x tile (full K=I)
                pl.BlockSpec((TM, Hp), lambda i, j: (i, 0)),   # h tile (full K=H)
                pl.BlockSpec((Ip, TN), lambda i, j: (0, j)),   # W_ih^T column slab
                pl.BlockSpec((Hp, TN), lambda i, j: (0, j)),   # W_hh^T column slab
                pl.BlockSpec((1, TN), lambda i, j: (0, j)),    # bias
            ],
            out_specs=pl.BlockSpec((TM, TN), lambda i, j: (i, j)),
        ),
        compiler_params=pltpu.CompilerParams(
            dimension_semantics=("parallel", "parallel"),
            vmem_limit_bytes=48 * 1024 * 1024,  # <= v7x physical 64 MiB
        ),
    )(x_p, h_p, w_ih_t, w_hh_t, bias)

    return out[:B, :H]


# ----------------------------------------------------------------------------
# Multi-step (time-loop) kernel: weights stay VMEM-resident across T steps.
# ----------------------------------------------------------------------------
def rnn_sequence_kernel(x_ref, wih_ref, whh_ref, b_ref, h0_ref, out_ref, h_sc):
    @pl.when(pl.program_id(0) == 0)
    def _():
        h_sc[...] = h0_ref[...].astype(jnp.float32)

    acc = jnp.dot(x_ref[0], wih_ref[...], preferred_element_type=jnp.float32)
    acc = acc + jnp.dot(h_sc[...].astype(whh_ref.dtype), whh_ref[...],
                        preferred_element_type=jnp.float32)
    h_new = jnp.tanh(acc + b_ref[...])
    h_sc[...] = h_new
    out_ref[0] = h_new.astype(out_ref.dtype)


@jax.jit
def rnn_sequence_forward(x_seq, h0, w_ih_t, w_hh_t, bias):
    """x_seq: (T, B, I), h0: (B, H) -> all hidden states (T, B, H).

    Single pallas_call; weight BlockSpecs are constant in t, so the weights are
    DMA'd from HBM once and reused for every timestep.
    """
    T, B, I = x_seq.shape
    H = h0.shape[1]
    Ip, Hp = w_ih_t.shape
    op_dtype = w_ih_t.dtype
    b_align = 8 if op_dtype.itemsize >= 4 else 16
    Bp = _round_up(max(B, b_align), b_align)

    x_p = jnp.pad(x_seq, ((0, 0), (0, Bp - B), (0, Ip - I))).astype(op_dtype)
    h0_p = jnp.pad(h0, ((0, Bp - B), (0, Hp - H))).astype(jnp.float32)

    out = pl.pallas_call(
        rnn_sequence_kernel,
        out_shape=jax.ShapeDtypeStruct((T, Bp, Hp), x_seq.dtype),
        grid_spec=pltpu.PrefetchScalarGridSpec(
            num_scalar_prefetch=0,
            grid=(T,),
            in_specs=[
                pl.BlockSpec((1, Bp, Ip), lambda t: (t, 0, 0)),  # x_t
                pl.BlockSpec((Ip, Hp), lambda t: (0, 0)),        # resident weight
                pl.BlockSpec((Hp, Hp), lambda t: (0, 0)),        # resident weight
                pl.BlockSpec((1, Hp), lambda t: (0, 0)),         # resident bias
                pl.BlockSpec((Bp, Hp), lambda t: (0, 0)),        # h0
            ],
            out_specs=pl.BlockSpec((1, Bp, Hp), lambda t: (t, 0, 0)),
            scratch_shapes=[pltpu.VMEM((Bp, Hp), jnp.float32)],  # carried hidden
        ),
        compiler_params=pltpu.CompilerParams(
            dimension_semantics=("arbitrary",),  # sequential recurrence over t
            vmem_limit_bytes=48 * 1024 * 1024,
        ),
    )(x_p, w_ih_t, w_hh_t, bias, h0_p)

    return out[:, :B, :H]


# ----------------------------------------------------------------------------
# Init / reference
# ----------------------------------------------------------------------------
def init_rnncell_params(key, input_size, hidden_size, dtype=jnp.float32):
    """torch.nn.RNNCell init: U(-1/sqrt(H), 1/sqrt(H))."""
    k1, k2, k3, k4 = jax.random.split(key, 4)
    bound = 1.0 / math.sqrt(hidden_size)
    w_ih = jax.random.uniform(k1, (hidden_size, input_size), dtype, -bound, bound)
    w_hh = jax.random.uniform(k2, (hidden_size, hidden_size), dtype, -bound, bound)
    b_ih = jax.random.uniform(k3, (hidden_size,), dtype, -bound, bound)
    b_hh = jax.random.uniform(k4, (hidden_size,), dtype, -bound, bound)
    return w_ih, w_hh, b_ih, b_hh


def _reference(x, h, w_ih, w_hh, b_ih, b_hh):
    return jnp.tanh(x @ w_ih.T + b_ih + h @ w_hh.T + b_hh)


if __name__ == "__main__":
    # --- Shapes implied by the PyTorch Model spec --------------------------
    batch_size, input_size, hidden_size = 1, 4, 4

    key = jax.random.PRNGKey(0)
    kx, kp, kb, ks = jax.random.split(key, 4)

    x = jax.random.normal(kx, (batch_size, input_size), jnp.float32)
    h0 = jnp.zeros((batch_size, hidden_size), jnp.float32)  # Model.init_hidden()

    w_ih, w_hh, b_ih, b_hh = init_rnncell_params(kp, input_size, hidden_size)
    w_ih_t, w_hh_t, bias = prepare_rnncell_params(w_ih, w_hh, b_ih, b_hh)

    h1 = jax.block_until_ready(rnn_cell_forward(x, h0, w_ih_t, w_hh_t, bias))
    ref = _reference(x, h0, w_ih, w_hh, b_ih, b_hh)
    assert jnp.allclose(h1, ref, atol=1e-5, rtol=1e-5), (h1, ref)

    # --- Larger shape: exercises padding + a multi-tile parallel grid ------
    B2, I2, H2 = 32, 200, 700
    k1, k2 = jax.random.split(kb)
    x2 = jax.random.normal(k1, (B2, I2), jnp.float32)
    h2 = jax.random.normal(k2, (B2, H2), jnp.float32)
    w_ih2, w_hh2, b_ih2, b_hh2 = init_rnncell_params(kp, I2, H2)
    ref2 = _reference(x2, h2, w_ih2, w_hh2, b_ih2, b_hh2)

    wi2, wh2, b2 = prepare_rnncell_params(w_ih2, w_hh2, b_ih2, b_hh2)
    out2 = jax.block_until_ready(rnn_cell_forward(x2, h2, wi2, wh2, b2))
    assert jnp.allclose(out2, ref2, atol=1e-4, rtol=1e-4)

    # --- bf16 MXU-operand path (v6e/v7x); f32 accumulation/epilogue --------
    wi2b, wh2b, b2b = prepare_rnncell_params(
        w_ih2, w_hh2, b_ih2, b_hh2, mxu_dtype=jnp.bfloat16)
    out2b = jax.block_until_ready(rnn_cell_forward(x2, h2, wi2b, wh2b, b2b))
    assert jnp.allclose(out2b, ref2, atol=2e-2, rtol=2e-2)

    # --- Time-loop kernel: T steps in one pallas_call, weights resident ----
    T = 6
    x_seq = jax.random.normal(ks, (T, batch_size, input_size), jnp.float32)
    seq_out = jax.block_until_ready(
        rnn_sequence_forward(x_seq, h0, w_ih_t, w_hh_t, bias))
    h_ref = h0
    for t in range(T):
        h_ref = _reference(x_seq[t], h_ref, w_ih, w_hh, b_ih, b_hh)
        assert jnp.allclose(seq_out[t], h_ref, atol=1e-5, rtol=1e-5), t

    print("KERNEL_OK")
</pallas_src>

<mosaic_0001>
module attributes {stable_mosaic.version = 11 : i64} {
  func.func @rnn_cell_kernel(%arg0: i32, %arg1: i32, %arg2: memref<8x128xf32, #tpu.memory_space<vmem>>, %arg3: memref<8x128xf32, #tpu.memory_space<vmem>>, %arg4: memref<128x128xf32, #tpu.memory_space<vmem>>, %arg5: memref<128x128xf32, #tpu.memory_space<vmem>>, %arg6: memref<1x128xf32, #tpu.memory_space<vmem>>, %arg7: memref<8x128xf32, #tpu.memory_space<vmem>>) attributes {dimension_semantics = [#tpu.dimension_semantics<parallel>, #tpu.dimension_semantics<parallel>], iteration_bounds = array<i64: 1, 1>, scalar_prefetch = 0 : i64, scratch_operands = 0 : i64, tpu.core_type = #tpu.core_type<tc>, window_params = [{transform_indices = @transform_0, window_bounds = array<i64: 8, 128>}, {transform_indices = @transform_1, window_bounds = array<i64: 8, 128>}, {transform_indices = @transform_2, window_bounds = array<i64: 128, 128>}, {transform_indices = @transform_3, window_bounds = array<i64: 128, 128>}, {transform_indices = @transform_4, window_bounds = array<i64: 1, 128>}, {transform_indices = @transform_5, window_bounds = array<i64: 8, 128>}]} {
    %c0 = arith.constant 0 : index
    %c0_0 = arith.constant 0 : index
    %0 = vector.load %arg2[%c0, %c0_0] : memref<8x128xf32, #tpu.memory_space<vmem>>, vector<8x128xf32>
    %c0_1 = arith.constant 0 : index
    %c0_2 = arith.constant 0 : index
    %1 = vector.load %arg4[%c0_1, %c0_2] : memref<128x128xf32, #tpu.memory_space<vmem>>, vector<128x128xf32>
    %cst = arith.constant dense<0.000000e+00> : vector<8x128xf32>
    %2 = tpu.matmul %0, %1, %cst {dimension_numbers = #tpu.dot_dimension_numbers<[1], [0], [0], [1], [0, 0, 1, 1], [], []>} : vector<8x128xf32>, vector<128x128xf32>, vector<8x128xf32> -> vector<8x128xf32>
    %c0_3 = arith.constant 0 : index
    %c0_4 = arith.constant 0 : index
    %3 = vector.load %arg3[%c0_3, %c0_4] : memref<8x128xf32, #tpu.memory_space<vmem>>, vector<8x128xf32>
    %c0_5 = arith.constant 0 : index
    %c0_6 = arith.constant 0 : index
    %4 = vector.load %arg5[%c0_5, %c0_6] : memref<128x128xf32, #tpu.memory_space<vmem>>, vector<128x128xf32>
    %cst_7 = arith.constant dense<0.000000e+00> : vector<8x128xf32>
    %5 = tpu.matmul %3, %4, %cst_7 {dimension_numbers = #tpu.dot_dimension_numbers<[1], [0], [0], [1], [0, 0, 1, 1], [], []>} : vector<8x128xf32>, vector<128x128xf32>, vector<8x128xf32> -> vector<8x128xf32>
    %6 = arith.addf %2, %5 : vector<8x128xf32>
    %c0_8 = arith.constant 0 : index
    %c0_9 = arith.constant 0 : index
    %7 = vector.load %arg6[%c0_8, %c0_9] : memref<1x128xf32, #tpu.memory_space<vmem>>, vector<1x128xf32>
    %8 = vector.broadcast %7 : vector<1x128xf32> to vector<8x128xf32>
    %9 = arith.addf %6, %8 : vector<8x128xf32>
    %10 = math.tanh %9 : vector<8x128xf32>
    %c0_10 = arith.constant 0 : index
    %c0_11 = arith.constant 0 : index
    %11 = vector.load %arg7[%c0_10, %c0_11] : memref<8x128xf32, #tpu.memory_space<vmem>>, vector<8x128xf32>
    tpu.vector_store %arg7[%c0_10, %c0_11], %10 {strides = array<i32>} : memref<8x128xf32, #tpu.memory_space<vmem>>, vector<8x128xf32>,
    return
  }
  func.func @transform_0(%arg0: i32, %arg1: i32) -> (i32, i32) {
    %c0_i32 = arith.constant 0 : i32
    %c0_i32_0 = arith.constant 0 : i32
    return %arg0, %c0_i32 : i32, i32
  }
  func.func @transform_1(%arg0: i32, %arg1: i32) -> (i32, i32) {
    %c0_i32 = arith.constant 0 : i32
    %c0_i32_0 = arith.constant 0 : i32
    return %arg0, %c0_i32 : i32, i32
  }
  func.func @transform_2(%arg0: i32, %arg1: i32) -> (i32, i32) {
    %c0_i32 = arith.constant 0 : i32
    %c0_i32_0 = arith.constant 0 : i32
    return %c0_i32, %arg1 : i32, i32
  }
  func.func @transform_3(%arg0: i32, %arg1: i32) -> (i32, i32) {
    %c0_i32 = arith.constant 0 : i32
    %c0_i32_0 = arith.constant 0 : i32
    return %c0_i32, %arg1 : i32, i32
  }
  func.func @transform_4(%arg0: i32, %arg1: i32) -> (i32, i32) {
    %c0_i32 = arith.constant 0 : i32
    %c0_i32_0 = arith.constant 0 : i32
    return %c0_i32, %arg1 : i32, i32
  }
  func.func @transform_5(%arg0: i32, %arg1: i32) -> (i32, i32) {
    %c0_i32 = arith.constant 0 : i32
    return %arg0, %arg1 : i32, i32
  }
}

</mosaic_0001>

<llo_original>
// kernel: rnn_cell_forward.1
$region0: #{rnn_cell_forward.1}
  #allocation0 [shape = 'u32[]', space=smem, size = 0x4, offset = 0x4, fixed_abs, tag = 'smem constant byte address 0x4 - core index']
  #allocation1 [shape = 'u32[144,128]{1,0:T(1,128)}', space=vmem, size = 0x12000, scoped, tag = 'internal scratch']
  %s0 = inlined_call_operand.vmem [shape: f32[8,128], index: 0, kind: input, shape index: {}]
  %s1 = inlined_call_operand.vmem [shape: f32[8,128], index: 1, kind: input, shape index: {}]
  %s2 = inlined_call_operand.hbm [shape: f32[128,128], index: 2, kind: input, shape index: {}]
  %s3 = inlined_call_operand.hbm [shape: f32[128,128], index: 3, kind: input, shape index: {}]
  %s4 = inlined_call_operand.vmem [shape: f32[1,128], index: 4, kind: input, shape index: {}]
  %s5 = inlined_call_operand.vmem [shape: f32[8,128], index: 5, kind: output, shape index: {}]
  %s6 = sld [smem:[#allocation0]]
  $region38: #{rnn_cell_forward.1} parent=0
    _
  %s8 = ssub.s32 1, %s6
  %s9 = scalar_select 0, %s8, %s6
  $region1: #{rnn_cell_forward.1} parent=0
    #allocation2 [shape = 'u8[65536]{0}', space=vmem, size = 0x10000, scoped, tag = 'input window, operand 2, single buffered']
    #allocation3 [shape = 's32[1]{0}', space=sflag, size = 0x4, scoped, tag = 'scoped memory for rnn_cell_forward.1']
    #allocation4 [shape = 'u8[65536]{0}', space=vmem, size = 0x10000, scoped, tag = 'input window, operand 3, single buffered']
    #allocation5 [shape = 's32[1]{0}', space=sflag, size = 0x4, scoped, tag = 'scoped memory for rnn_cell_forward.1']
    %10 = vsyncpa [#allocation3], 0
    %11 = vsyncpa [#allocation5], 0
    // Predicated region
    $region2: #{rnn_cell_forward.1} parent=1 // pred_check
      _
    $region3: #{rnn_cell_forward.1} parent=1 // pred_check_branch
      %13 = sbr.rel (0) target = $region5
    $region4: #{rnn_cell_forward.1} parent=1 // pred_region
      _
    $region5: #{rnn_cell_forward.1} parent=1 // pred_fallthru
      _
    // Predicated region
    $region6: #{rnn_cell_forward.1} parent=1 // pred_check
      _
    $region7: #{rnn_cell_forward.1} parent=1 // pred_check_branch
      %15 = sbr.rel (0) target = $region9
    $region8: #{rnn_cell_forward.1} parent=1 // pred_region
      _
    $region9: #{rnn_cell_forward.1} parent=1 // pred_fallthru
      _
    // Predicated region
    $region10: #{rnn_cell_forward.1} parent=1 // pred_check
      _
    $region11: #{rnn_cell_forward.1} parent=1 // pred_check_branch
      %17 = sbr.rel (0) target = $region13
    $region12: #{rnn_cell_forward.1} parent=1 // pred_region
      %s19 = ssub.s32 2048, 2048
      %20 = vsyncadd [#allocation3], %s19
      %s21 = sshll.u32 [#allocation2], 4
      %s22 = int_to_ptr.vmem [resolvable:$true] %s21
      %27 = dma.hbm_to_vmem [thread:$0]  %s2, 2048, %s22, [#allocation3], 128, 128, 8
    $region13: #{rnn_cell_forward.1} parent=1 // pred_fallthru
      _
    // Predicated region
    $region14: #{rnn_cell_forward.1} parent=1 // pred_check
      _
    $region15: #{rnn_cell_forward.1} parent=1 // pred_check_branch
      %29 = sbr.rel (0) target = $region17
    $region16: #{rnn_cell_forward.1} parent=1 // pred_region
      %s31 = ssub.s32 2048, 2048
      %32 = vsyncadd [#allocation5], %s31
      %s33 = sshll.u32 [#allocation4], 4
      %s34 = int_to_ptr.vmem [resolvable:$true] %s33
      %39 = dma.hbm_to_vmem [thread:$0]  %s3, 2048, %s34, [#allocation5], 128, 128, 8
    $region17: #{rnn_cell_forward.1} parent=1 // pred_fallthru
      _
    // Predicated region
    $region18: #{rnn_cell_forward.1} parent=1 // pred_check
      _
    $region19: #{rnn_cell_forward.1} parent=1 // pred_check_branch
      %41 = sbr.rel (0) target = $region21
    $region20: #{rnn_cell_forward.1} parent=1 // pred_region
      _
    $region21: #{rnn_cell_forward.1} parent=1 // pred_fallthru
      _
    // Predicated region
    $region22: #{rnn_cell_forward.1} parent=1 // pred_check
      _
    $region23: #{rnn_cell_forward.1} parent=1 // pred_check_branch
      %43 = sbr.rel (0) target = $region25
    $region24: #{rnn_cell_forward.1} parent=1 // pred_region
      %44 = dma.done [#allocation3], 2048
    $region25: #{rnn_cell_forward.1} parent=1 // pred_fallthru
      _
    // Predicated region
    $region26: #{rnn_cell_forward.1} parent=1 // pred_check
      _
    $region27: #{rnn_cell_forward.1} parent=1 // pred_check_branch
      %46 = sbr.rel (0) target = $region29
    $region28: #{rnn_cell_forward.1} parent=1 // pred_region
      %47 = dma.done [#allocation5], 2048
    $region29: #{rnn_cell_forward.1} parent=1 // pred_fallthru
      _
    %v48 = vld [vmem:[%s0] sm:$0xff]
    %v49 = vld [vmem:[#allocation2] sm:$0xff]
    %v50 = vld [vmem:[#allocation2 + $0x8] sm:$0xff]
    %v51 = vld [vmem:[#allocation2 + $0x10] sm:$0xff]
    %v52 = vld [vmem:[#allocation2 + $0x18] sm:$0xff]
    %v53 = vld [vmem:[#allocation2 + $0x20] sm:$0xff]
    %v54 = vld [vmem:[#allocation2 + $0x28] sm:$0xff]
    %v55 = vld [vmem:[#allocation2 + $0x30] sm:$0xff]
    %v56 = vld [vmem:[#allocation2 + $0x38] sm:$0xff]
    %v57 = vld [vmem:[#allocation2 + $0x40] sm:$0xff]
    %v58 = vld [vmem:[#allocation2 + $0x48] sm:$0xff]
    %v59 = vld [vmem:[#allocation2 + $0x50] sm:$0xff]
    %v60 = vld [vmem:[#allocation2 + $0x58] sm:$0xff]
    %v61 = vld [vmem:[#allocation2 + $0x60] sm:$0xff]
    %v62 = vld [vmem:[#allocation2 + $0x68] sm:$0xff]
    %v63 = vld [vmem:[#allocation2 + $0x70] sm:$0xff]
    %v64 = vld [vmem:[#allocation2 + $0x78] sm:$0xff]
    %v65 = vld [vmem:[%s1] sm:$0xff]
    %v66 = vld [vmem:[#allocation4] sm:$0xff]
    %v67 = vld [vmem:[#allocation4 + $0x8] sm:$0xff]
    %v68 = vld [vmem:[#allocation4 + $0x10] sm:$0xff]
    %v69 = vld [vmem:[#allocation4 + $0x18] sm:$0xff]
    %v70 = vld [vmem:[#allocation4 + $0x20] sm:$0xff]
    %v71 = vld [vmem:[#allocation4 + $0x28] sm:$0xff]
    %v72 = vld [vmem:[#allocation4 + $0x30] sm:$0xff]
    %v73 = vld [vmem:[#allocation4 + $0x38] sm:$0xff]
    %v74 = vld [vmem:[#allocation4 + $0x40] sm:$0xff]
    %v75 = vld [vmem:[#allocation4 + $0x48] sm:$0xff]
    %v76 = vld [vmem:[#allocation4 + $0x50] sm:$0xff]
    %v77 = vld [vmem:[#allocation4 + $0x58] sm:$0xff]
    %v78 = vld [vmem:[#allocation4 + $0x60] sm:$0xff]
    %v79 = vld [vmem:[#allocation4 + $0x68] sm:$0xff]
    %v80 = vld [vmem:[#allocation4 + $0x70] sm:$0xff]
    %v81 = vld [vmem:[#allocation4 + $0x78] sm:$0xff]
    %82 = vmatprep.subr.mxu0 0.0
    %83 = vmatpush1.msra.mxu0 %v66
    %84 = vmatprep.subr.mxu0 0.0
    %85 = vmatpush1.msra.mxu0 %v67
    %86 = vmatprep.subr.mxu0 0.0
    %87 = vmatpush1.msra.mxu0 %v68
    %88 = vmatprep.subr.mxu0 0.0
    %89 = vmatpush1.msra.mxu0 %v69
    %90 = vmatprep.subr.mxu0 0.0
    %91 = vmatpush1.msra.mxu0 %v70
    %92 = vmatprep.subr.mxu0 0.0
    %93 = vmatpush1.msra.mxu0 %v71
    %94 = vmatprep.subr.mxu0 0.0
    %95 = vmatpush1.msra.mxu0 %v72
    %96 = vmatprep.subr.mxu0 0.0
    %97 = vmatpush1.msra.mxu0 %v73
    %98 = vmatprep.subr.mxu0 0.0
    %99 = vmatpush1.msra.mxu0 %v74
    %100 = vmatprep.subr.mxu0 0.0
    %101 = vmatpush1.msra.mxu0 %v75
    %102 = vmatprep.subr.mxu0 0.0
    %103 = vmatpush1.msra.mxu0 %v76
    %104 = vmatprep.subr.mxu0 0.0
    %105 = vmatpush1.msra.mxu0 %v77
    %106 = vmatprep.subr.mxu0 0.0
    %107 = vmatpush1.msra.mxu0 %v78
    %108 = vmatprep.subr.mxu0 0.0
    %109 = vmatpush1.msra.mxu0 %v79
    %110 = vmatprep.subr.mxu0 0.0
    %111 = vmatpush1.msra.mxu0 %v80
    %112 = vmatprep.subr.mxu0 0.0
    %113 = vmatpush1.msra.mxu0 %v81
    %114 = vmatprep.subr.mxu0 0.0
    %115 = vmatpush1.msra.mxu0 0.0
    %116 = vmatprep.subr.mxu0 0.0
    %117 = vmatpush1.msra.mxu0 0.0
    %118 = vmatprep.subr.mxu0 0.0
    %119 = vmatpush1.msra.mxu0 0.0
    %120 = vmatprep.subr.mxu0 0.0
    %121 = vmatpush1.msra.mxu0 0.0
    %122 = vmatprep.subr.mxu0 0.0
    %123 = vmatpush1.msra.mxu0 0.0
    %124 = vmatprep.subr.mxu0 0.0
    %125 = vmatpush1.msra.mxu0 0.0
    %126 = vmatprep.subr.mxu0 0.0
    %127 = vmatpush1.msra.mxu0 0.0
    %128 = vmatprep.subr.mxu0 0.0
    %129 = vmatpush1.msra.mxu0 0.0
    %130 = vmatprep.subr.mxu0 0.0
    %131 = vmatpush1.msra.mxu0 0.0
    %132 = vmatprep.subr.mxu0 0.0
    %133 = vmatpush1.msra.mxu0 0.0
    %134 = vmatprep.subr.mxu0 0.0
    %135 = vmatpush1.msra.mxu0 0.0
    %136 = vmatprep.subr.mxu0 0.0
    %137 = vmatpush1.msra.mxu0 0.0
    %138 = vmatprep.subr.mxu0 0.0
    %139 = vmatpush1.msra.mxu0 0.0
    %140 = vmatprep.subr.mxu0 0.0
    %141 = vmatpush1.msra.mxu0 0.0
    %142 = vmatprep.subr.mxu0 0.0
    %143 = vmatpush1.msra.mxu0 0.0
    %144 = vmatprep.subr.mxu0 0.0
    %145 = vmatpush1.msra.mxu0 0.0
    %146 = vmatprep.mubr.f32.mxu0 0.0
    %147 = vmatmul.mubr.f32.gmra.mrb[0].mxu0 %v65
    %v148 = vpop.f32.mrb[0].mxu0
    %v149 = vadd.f32 0.0, %v148
    %v150 = vpop.f32.mrb[0].mxu0
    %151 = vdwg.mxu0
    %152 = vmatprep.subr.mxu0 0.0
    %153 = vmatpush1.msra.mxu0 %v49
    %154 = vmatprep.subr.mxu0 0.0
    %155 = vmatpush1.msra.mxu0 %v50
    %156 = vmatprep.subr.mxu0 0.0
    %157 = vmatpush1.msra.mxu0 %v51
    %158 = vmatprep.subr.mxu0 0.0
    %159 = vmatpush1.msra.mxu0 %v52
    %160 = vmatprep.subr.mxu0 0.0
    %161 = vmatpush1.msra.mxu0 %v53
    %162 = vmatprep.subr.mxu0 0.0
    %163 = vmatpush1.msra.mxu0 %v54
    %164 = vmatprep.subr.mxu0 0.0
    %165 = vmatpush1.msra.mxu0 %v55
    %166 = vmatprep.subr.mxu0 0.0
    %167 = vmatpush1.msra.mxu0 %v56
    %168 = vmatprep.subr.mxu0 0.0
    %169 = vmatpush1.msra.mxu0 %v57
    %170 = vmatprep.subr.mxu0 0.0
    %171 = vmatpush1.msra.mxu0 %v58
    %172 = vmatprep.subr.mxu0 0.0
    %173 = vmatpush1.msra.mxu0 %v59
    %174 = vmatprep.subr.mxu0 0.0
    %175 = vmatpush1.msra.mxu0 %v60
    %176 = vmatprep.subr.mxu0 0.0
    %177 = vmatpush1.msra.mxu0 %v61
    %178 = vmatprep.subr.mxu0 0.0
    %179 = vmatpush1.msra.mxu0 %v62
    %180 = vmatprep.subr.mxu0 0.0
    %181 = vmatpush1.msra.mxu0 %v63
    %182 = vmatprep.subr.mxu0 0.0
    %183 = vmatpush1.msra.mxu0 %v64
    %184 = vmatprep.subr.mxu0 0.0
    %185 = vmatpush1.msra.mxu0 0.0
    %186 = vmatprep.subr.mxu0 0.0
    %187 = vmatpush1.msra.mxu0 0.0
    %188 = vmatprep.subr.mxu0 0.0
    %189 = vmatpush1.msra.mxu0 0.0
    %190 = vmatprep.subr.mxu0 0.0
    %191 = vmatpush1.msra.mxu0 0.0
    %192 = vmatprep.subr.mxu0 0.0
    %193 = vmatpush1.msra.mxu0 0.0
    %194 = vmatprep.subr.mxu0 0.0
    %195 = vmatpush1.msra.mxu0 0.0
    %196 = vmatprep.subr.mxu0 0.0
    %197 = vmatpush1.msra.mxu0 0.0
    %198 = vmatprep.subr.mxu0 0.0
    %199 = vmatpush1.msra.mxu0 0.0
    %200 = vmatprep.subr.mxu0 0.0
    %201 = vmatpush1.msra.mxu0 0.0
    %202 = vmatprep.subr.mxu0 0.0
    %203 = vmatpush1.msra.mxu0 0.0
    %204 = vmatprep.subr.mxu0 0.0
    %205 = vmatpush1.msra.mxu0 0.0
    %206 = vmatprep.subr.mxu0 0.0
    %207 = vmatpush1.msra.mxu0 0.0
    %208 = vmatprep.subr.mxu0 0.0
    %209 = vmatpush1.msra.mxu0 0.0
    %210 = vmatprep.subr.mxu0 0.0
    %211 = vmatpush1.msra.mxu0 0.0
    %212 = vmatprep.subr.mxu0 0.0
    %213 = vmatpush1.msra.mxu0 0.0
    %214 = vmatprep.subr.mxu0 0.0
    %215 = vmatpush1.msra.mxu0 0.0
    %216 = vmatprep.mubr.f32.mxu0 0.0
    %217 = vmatmul.mubr.f32.gmra.mrb[0].mxu0 %v48
    %v218 = vpop.f32.mrb[0].mxu0
    %v219 = vadd.f32 %v149, %v218
    %v220 = vpop.f32.mrb[0].mxu0
    %221 = vdwg.mxu0
    %v222 = vld [vmem:[%s4] sm:$0x1]
    %v224 = vlaneseq
    %v225 = vshrl.u32 %v224, 7
    %v226 = vsub.s32 0, %v225
    %v227 = vrot.slane %v222, %v226
    %v229 = vadd.f32 %v219, %v227
    %v230 = vtanh.pop %v229
    %231 = vst [vmem:[%s5] sm:$0xff] %v230
    // Predicated region
    $region30: #{rnn_cell_forward.1} parent=1 // pred_check
      _
    $region31: #{rnn_cell_forward.1} parent=1 // pred_check_branch
      %233 = sbr.rel (0) target = $region33
    $region32: #{rnn_cell_forward.1} parent=1 // pred_region
      _
    $region33: #{rnn_cell_forward.1} parent=1 // pred_fallthru
      _
    // Predicated region
    $region34: #{rnn_cell_forward.1} parent=1 // pred_check
      _
    $region35: #{rnn_cell_forward.1} parent=1 // pred_check_branch
      %235 = sbr.rel (0) target = $region37
    $region36: #{rnn_cell_forward.1} parent=1 // pred_region
      _
    $region37: #{rnn_cell_forward.1} parent=1 // pred_fallthru
      _
    %236 = vsyncpa [#allocation3], 1
    %237 = vsyncpa [#allocation5], 1

</llo_original>
